<compile_context>
chip_gen: v7x
topology: tpu7x:2x2x1
jax: 0.10.0
libtpu: 0.0.40
codegen_flags: <defaults>
</compile_context>

<pallas_src>
import functools

import jax
import jax.numpy as jnp
from jax.experimental import pallas as pl
from jax.experimental.pallas import tpu as pltpu

MLP_NEURONS = 1024
N_CLASSES = 2


def _round_up(x, m):
    return ((x + m - 1) // m) * m


def _vmem_capacity_bytes():
    """Per-core VMEM capacity; conservative (v7x = 64 MiB) if unknown."""
    try:
        info = pltpu.get_tpu_info()
        return int(getattr(info, "vmem_capacity_bytes", 64 << 20))
    except Exception:
        return 64 << 20


def _k_plan(n_embd):
    """(tk, k_steps, d_pad): K-tile the contraction only when n_embd is large."""
    if n_embd <= 2048:
        return n_embd, 1, n_embd
    tk = 1024
    d_pad = _round_up(n_embd, tk)
    return tk, d_pad // tk, d_pad


def _estimate_vmem(tm, tk, k_steps, x_bytes):
    w1_bufs = 2 if k_steps > 1 else 1
    return (2 * tm * tk * x_bytes                  # x tiles (double-buffered)
            + w1_bufs * tk * MLP_NEURONS * 2       # w1 tiles (bf16)
            + 2 * MLP_NEURONS * 4                  # b1 + v (single-buffered)
            + tm * MLP_NEURONS * 4                 # f32 accumulator scratch
            + 2 * tm * MLP_NEURONS * 4             # live epilogue temporaries
            + 2 * tm * 4                           # output tiles
            + (2 << 20))                           # Mosaic internal slack


def _plan_row_tile(M, tk, k_steps, x_bytes, budget):
    """Row tile tm: >=4 grid steps when possible (>=2 per v7x TensorCore),
    fits the VMEM budget, and prefers a tile dividing the (8-padded) row count
    so the wrapper never has to jnp.pad the activations."""
    M8 = _round_up(max(M, 1), 8)
    tm = min(1024, max(8, _round_up(pl.cdiv(M8, 4), 8)))
    while tm > 8 and _estimate_vmem(tm, tk, k_steps, x_bytes) > budget:
        tm = max(8, _round_up(tm // 2, 8))
    for cand in range(tm, max(tm // 2, 8) - 1, -8):
        if M8 % cand == 0:
            return cand
    return tm  # no acceptable divisor: wrapper pads the rows (rare)


def _as2_head_kernel(x_ref, w1_ref, b1_ref, v_ref, c1_ref, c2b_ref, o_ref,
                     acc_ref, *, eps):
    # x_ref:   (tm, tk)    caller dtype    w1_ref:  (tk, 1024) bf16
    # b1_ref:  (1, 1024)   f32             v_ref:   (1, 1024)  f32 (= gamma*w2d)
    # c1_ref:  (1, 1)      f32 (= sum(gamma*w2d))
    # c2b_ref: (1, 1)      f32 (= sum(beta*w2d) + (b2[1]-b2[0]))
    # o_ref:   (tm, 1)     f32 (= P(class 1))
    # acc_ref: (tm, 1024)  f32 accumulator scratch
    k = pl.program_id(1)
    nk = pl.num_programs(1)

    # ---- Linear 1 partial product on the MXU: bf16 operands, f32 accum -----
    part = jnp.dot(x_ref[...].astype(jnp.bfloat16), w1_ref[...],
                   preferred_element_type=jnp.float32)

    @pl.when(k == 0)
    def _():
        acc_ref[...] = part

    @pl.when(k != 0)
    def _():
        acc_ref[...] += part

    # ---- Epilogue on the last K step (all f32: v5e has no bf16 VPU/EUP) ----
    @pl.when(k == nk - 1)
    def _():
        h = jnp.maximum(acc_ref[...] + b1_ref[...], 0.0)      # bias + ReLU
        inv_n = 1.0 / MLP_NEURONS
        s1 = jnp.sum(h, axis=-1, keepdims=True)
        s2 = jnp.sum(h * h, axis=-1, keepdims=True)
        s3 = jnp.sum(h * v_ref[...], axis=-1, keepdims=True)
        mean = s1 * inv_n
        # One-pass variance; max() guards small cancellation.
        # TODO(synk): switch to centered two-pass variance if tighter accuracy
        # is ever required (costs one extra (tm,1024) pass).
        var = jnp.maximum(s2 * inv_n - mean * mean, 0.0)
        inv = jax.lax.rsqrt(var + eps)
        # Dropout is identity in inference mode.
        # TODO(synk): training-mode dropout would use pltpu.prng_seed/bits.
        # Fused LayerNorm-affine + Linear2 logit difference:
        #   d = sum(hn * w2d) + b2d = inv*(s3 - mean*c1) + c2b
        d = inv * (s3 - mean * c1_ref[...]) + c2b_ref[...]
        # softmax over 2 classes == sigmoid(d); exp on EUP, approx reciprocal.
        o_ref[...] = pl.reciprocal(1.0 + jnp.exp(-d), approx=True)


def prepare_params(params):
    """One-time parameter preprocessing hoisted out of the forward path:
    bf16 weight cast, K padding, and fusion of LayerNorm affine with Linear2."""
    w1, b1, gamma, beta, w2, b2 = params
    n_embd = w1.shape[0]
    _, _, d_pad = _k_plan(n_embd)

    w1p = w1.astype(jnp.bfloat16)                           # MXU-native
    if d_pad != n_embd:
        w1p = jnp.pad(w1p, ((0, d_pad - n_embd), (0, 0)))   # zero-pad K (once)

    w2d = (w2[:, 1] - w2[:, 0]).astype(jnp.float32)         # logit-diff weights
    gamma32 = gamma.astype(jnp.float32)
    beta32 = beta.astype(jnp.float32)
    v = (gamma32 * w2d).reshape(1, MLP_NEURONS)
    c1 = jnp.sum(gamma32 * w2d).reshape(1, 1).astype(jnp.float32)
    c2b = (jnp.sum(beta32 * w2d) + (b2[1] - b2[0])).reshape(1, 1).astype(jnp.float32)
    b1p = b1.reshape(1, MLP_NEURONS).astype(jnp.float32)
    return (w1p, b1p, v, c1, c2b)


def as2_head_forward(hidden_states, prepared_params, *, eps=1e-5, tm=None):
    """hidden_states: (B, S, n_embd) -> (B, S, 2) float32 softmax probabilities."""
    w1, b1, v, c1, c2b = prepared_params
    B, S, D = hidden_states.shape
    M = B * S
    # Keep the caller's dtype (bf16 stays bf16: half the x DMA bytes); the
    # kernel casts to bf16 for the MXU.
    x2d = hidden_states.reshape(M, D)

    tk, k_steps, d_pad = _k_plan(D)
    assert w1.shape == (d_pad, MLP_NEURONS), "params not prepared for this n_embd"
    if d_pad != D:
        # TODO(synk): only hit when n_embd > 2048 and not a multiple of the K
        # tile; padding x here costs one extra activation pass.
        x2d = jnp.pad(x2d, ((0, 0), (0, d_pad - D)))

    x_bytes = x2d.dtype.itemsize
    vmem_cap = _vmem_capacity_bytes()
    budget = (vmem_cap * 3) // 4
    if tm is None:
        tm = _plan_row_tile(M, tk, k_steps, x_bytes, budget)
    tm = max(8, _round_up(tm, 8))

    M_pad = _round_up(M, tm)
    if M_pad != M:
        x2d = jnp.pad(x2d, ((0, M_pad - M), (0, 0)))

    est = _estimate_vmem(tm, tk, k_steps, x_bytes)
    vmem_limit = int(min(max(est + (4 << 20), 32 << 20), vmem_cap - (4 << 20)))

    # w1 is single-buffered only when it is grid-invariant (no K tiling).
    if k_steps == 1:
        w1_spec = pl.BlockSpec((tk, MLP_NEURONS), lambda i, k: (k, 0),
                               pipeline_mode=pl.Buffered(1))
    else:
        w1_spec = pl.BlockSpec((tk, MLP_NEURONS), lambda i, k: (k, 0))

    kernel = functools.partial(_as2_head_kernel, eps=eps)

    # TODO(synk): a fully lane-dense (1, M_pad) transposed output would remove
    # the remaining masked stores, at the cost of an in-kernel relayout.
    out2d = pl.pallas_call(
        kernel,
        out_shape=jax.ShapeDtypeStruct((M_pad, 1), jnp.float32),
        grid_spec=pltpu.PrefetchScalarGridSpec(
            num_scalar_prefetch=0,
            grid=(M_pad // tm, k_steps),
            in_specs=[
                pl.BlockSpec((tm, tk), lambda i, k: (i, k)),              # x rows
                w1_spec,                                                   # w1 bf16
                pl.BlockSpec((1, MLP_NEURONS), lambda i, k: (0, 0),
                             pipeline_mode=pl.Buffered(1)),                # b1
                pl.BlockSpec((1, MLP_NEURONS), lambda i, k: (0, 0),
                             pipeline_mode=pl.Buffered(1)),                # gamma*w2d
                pl.BlockSpec((1, 1), lambda i, k: (0, 0),
                             pipeline_mode=pl.Buffered(1)),                # c1
                pl.BlockSpec((1, 1), lambda i, k: (0, 0),
                             pipeline_mode=pl.Buffered(1)),                # c2 + b2d
            ],
            out_specs=pl.BlockSpec((tm, 1), lambda i, k: (i, 0)),
            scratch_shapes=[pltpu.VMEM((tm, MLP_NEURONS), jnp.float32)],
        ),
        compiler_params=pltpu.CompilerParams(
            dimension_semantics=("parallel", "arbitrary"),
            vmem_limit_bytes=vmem_limit),
    )(x2d, w1, b1, v, c1, c2b)

    p1 = out2d[:M, 0]
    probs = jnp.stack([1.0 - p1, p1], axis=-1)
    return probs.reshape(B, S, N_CLASSES)


def init_params(key, n_embd):
    """Deterministic synthetic parameters matching the PyTorch shapes."""
    k1, k2, k3, k4 = jax.random.split(key, 4)
    # nn.Linear(n_embd, 1024): weight (1024, n_embd) -> stored transposed (n_embd, 1024)
    w1 = jax.random.normal(k1, (n_embd, MLP_NEURONS), jnp.float32) * 0.02
    b1 = jax.random.normal(k2, (MLP_NEURONS,), jnp.float32) * 0.02
    gamma = jnp.ones((MLP_NEURONS,), jnp.float32)
    beta = jnp.zeros((MLP_NEURONS,), jnp.float32)
    # nn.Linear(1024, 2)
    w2 = jax.random.normal(k3, (MLP_NEURONS, N_CLASSES), jnp.float32) * 0.02
    b2 = jax.random.normal(k4, (N_CLASSES,), jnp.float32) * 0.02
    return (w1, b1, gamma, beta, w2, b2)


def _reference_forward(hidden_states, params, eps=1e-5):
    """Pure-JAX f32 reference (matches the PyTorch module semantics)."""
    w1, b1, gamma, beta, w2, b2 = params
    h = hidden_states.astype(jnp.float32) @ w1 + b1
    h = jnp.maximum(h, 0.0)
    mean = jnp.mean(h, axis=-1, keepdims=True)
    var = jnp.mean((h - mean) ** 2, axis=-1, keepdims=True)
    h = (h - mean) * jax.lax.rsqrt(var + eps) * gamma + beta
    logits = h @ w2 + b2
    return jax.nn.softmax(logits, axis=-1)


if __name__ == "__main__":
    key = jax.random.PRNGKey(0)
    kx, kp = jax.random.split(key)

    batch, seq, n_embd = 2, 8, 32        # small shapes: (B, S, n_embd)
    hidden_states = jax.random.normal(kx, (batch, seq, n_embd), jnp.float32)
    params = init_params(kp, n_embd)
    prepared = prepare_params(params)    # one-time prep, out of the hot path

    out = as2_head_forward(hidden_states, prepared, eps=1e-5)
    out = jax.block_until_ready(out)

    ref = _reference_forward(hidden_states, params, eps=1e-5)
    assert out.shape == (batch, seq, N_CLASSES)
    # Rows must be valid probability distributions.
    assert jnp.allclose(jnp.sum(out, axis=-1), 1.0, atol=1e-5)
    # bf16 MXU operands (f32 accumulation) vs pure-f32 reference -> loose tol.
    assert jnp.allclose(out, ref, atol=2e-2, rtol=0.0), "mismatch vs reference"

    print("KERNEL_OK")
</pallas_src>

<mosaic_0001>
module attributes {stable_mosaic.version = 11 : i64} {
  func.func @_as2_head_kernel(%arg0: i32, %arg1: i32, %arg2: memref<8x32xf32, #tpu.memory_space<vmem>>, %arg3: memref<32x1024xbf16, #tpu.memory_space<vmem>>, %arg4: memref<1x1024xf32, #tpu.memory_space<vmem>>, %arg5: memref<1x1024xf32, #tpu.memory_space<vmem>>, %arg6: memref<1x1xf32, #tpu.memory_space<vmem>>, %arg7: memref<1x1xf32, #tpu.memory_space<vmem>>, %arg8: memref<8x1xf32, #tpu.memory_space<vmem>>, %arg9: memref<8x1024xf32, #tpu.memory_space<vmem>>) attributes {dimension_semantics = [#tpu.dimension_semantics<parallel>, #tpu.dimension_semantics<arbitrary>], iteration_bounds = array<i64: 2, 1>, scalar_prefetch = 0 : i64, scratch_operands = 1 : i64, tpu.core_type = #tpu.core_type<tc>, window_params = [{transform_indices = @transform_0, window_bounds = array<i64: 8, 32>}, {pipeline_mode = #tpu.pipeline_mode<synchronous>, transform_indices = @transform_1, window_bounds = array<i64: 32, 1024>}, {pipeline_mode = #tpu.pipeline_mode<synchronous>, transform_indices = @transform_2, window_bounds = array<i64: 1, 1024>}, {pipeline_mode = #tpu.pipeline_mode<synchronous>, transform_indices = @transform_3, window_bounds = array<i64: 1, 1024>}, {pipeline_mode = #tpu.pipeline_mode<synchronous>, transform_indices = @transform_4, window_bounds = array<i64: 1, 1>}, {pipeline_mode = #tpu.pipeline_mode<synchronous>, transform_indices = @transform_5, window_bounds = array<i64: 1, 1>}, {transform_indices = @transform_6, window_bounds = array<i64: 8, 1>}]} {
    %c0 = arith.constant 0 : index
    %c0_0 = arith.constant 0 : index
    %0 = vector.load %arg2[%c0, %c0_0] : memref<8x32xf32, #tpu.memory_space<vmem>>, vector<8x32xf32>
    %1 = arith.truncf %0 : vector<8x32xf32> to vector<8x32xbf16>
    %c0_1 = arith.constant 0 : index
    %c0_2 = arith.constant 0 : index
    %2 = vector.load %arg3[%c0_1, %c0_2] : memref<32x1024xbf16, #tpu.memory_space<vmem>>, vector<32x1024xbf16>
    %cst = arith.constant dense<0.000000e+00> : vector<8x1024xf32>
    %3 = tpu.matmul %1, %2, %cst {dimension_numbers = #tpu.dot_dimension_numbers<[1], [0], [0], [1], [0, 0, 1, 1], [], []>} : vector<8x32xbf16>, vector<32x1024xbf16>, vector<8x1024xf32> -> vector<8x1024xf32>
    %c0_i32 = arith.constant 0 : i32
    %4 = arith.cmpi eq, %arg1, %c0_i32 : i32
    %5 = arith.extui %4 : i1 to i32
    %c0_i32_3 = arith.constant 0 : i32
    %6 = arith.cmpi ne, %5, %c0_i32_3 : i32
    scf.if %6 {
      %c0_8 = arith.constant 0 : index
      %c0_9 = arith.constant 0 : index
      %13 = vector.load %arg9[%c0_8, %c0_9] : memref<8x1024xf32, #tpu.memory_space<vmem>>, vector<8x1024xf32>
      tpu.vector_store %arg9[%c0_8, %c0_9], %3 {strides = array<i32>} : memref<8x1024xf32, #tpu.memory_space<vmem>>, vector<8x1024xf32>,
    } else {
    }
    %c0_i32_4 = arith.constant 0 : i32
    %7 = arith.cmpi ne, %arg1, %c0_i32_4 : i32
    %8 = arith.extui %7 : i1 to i32
    %c0_i32_5 = arith.constant 0 : i32
    %9 = arith.cmpi ne, %8, %c0_i32_5 : i32
    scf.if %9 {
      %c0_8 = arith.constant 0 : index
      %c0_9 = arith.constant 0 : index
      %13 = vector.load %arg9[%c0_8, %c0_9] : memref<8x1024xf32, #tpu.memory_space<vmem>>, vector<8x1024xf32>
      %14 = arith.addf %13, %3 : vector<8x1024xf32>
      %c0_10 = arith.constant 0 : index
      %c0_11 = arith.constant 0 : index
      %15 = vector.load %arg9[%c0_10, %c0_11] : memref<8x1024xf32, #tpu.memory_space<vmem>>, vector<8x1024xf32>
      tpu.vector_store %arg9[%c0_10, %c0_11], %14 {strides = array<i32>} : memref<8x1024xf32, #tpu.memory_space<vmem>>, vector<8x1024xf32>,
    } else {
    }
    %c0_i32_6 = arith.constant 0 : i32
    %10 = arith.cmpi eq, %arg1, %c0_i32_6 : i32
    %11 = arith.extui %10 : i1 to i32
    %c0_i32_7 = arith.constant 0 : i32
    %12 = arith.cmpi ne, %11, %c0_i32_7 : i32
    scf.if %12 {
      %c0_8 = arith.constant 0 : index
      %c0_9 = arith.constant 0 : index
      %13 = vector.load %arg9[%c0_8, %c0_9] : memref<8x1024xf32, #tpu.memory_space<vmem>>, vector<8x1024xf32>
      %c0_10 = arith.constant 0 : index
      %c0_11 = arith.constant 0 : index
      %14 = vector.load %arg4[%c0_10, %c0_11] : memref<1x1024xf32, #tpu.memory_space<vmem>>, vector<1x1024xf32>
      %15 = vector.broadcast %14 : vector<1x1024xf32> to vector<8x1024xf32>
      %16 = arith.addf %13, %15 : vector<8x1024xf32>
      %cst_12 = arith.constant 0.000000e+00 : f32
      %17 = vector.broadcast %cst_12 : f32 to vector<8x1024xf32>
      %18 = arith.maximumf %16, %17 : vector<8x1024xf32>
      %cst_13 = arith.constant dense<0.000000e+00> : vector<8xf32>
      %19 = vector.multi_reduction <add>, %18, %cst_13 [1] : vector<8x1024xf32> to vector<8xf32>
      %20 = vector.shape_cast %19 : vector<8xf32> to vector<8x1xf32>
      %21 = arith.mulf %18, %18 : vector<8x1024xf32>
      %cst_14 = arith.constant dense<0.000000e+00> : vector<8xf32>
      %22 = vector.multi_reduction <add>, %21, %cst_14 [1] : vector<8x1024xf32> to vector<8xf32>
      %23 = vector.shape_cast %22 : vector<8xf32> to vector<8x1xf32>
      %c0_15 = arith.constant 0 : index
      %c0_16 = arith.constant 0 : index
      %24 = vector.load %arg5[%c0_15, %c0_16] : memref<1x1024xf32, #tpu.memory_space<vmem>>, vector<1x1024xf32>
      %25 = vector.broadcast %24 : vector<1x1024xf32> to vector<8x1024xf32>
      %26 = arith.mulf %18, %25 : vector<8x1024xf32>
      %cst_17 = arith.constant dense<0.000000e+00> : vector<8xf32>
      %27 = vector.multi_reduction <add>, %26, %cst_17 [1] : vector<8x1024xf32> to vector<8xf32>
      %28 = vector.shape_cast %27 : vector<8xf32> to vector<8x1xf32>
      %cst_18 = arith.constant 9.765625E-4 : f32
      %29 = vector.broadcast %cst_18 : f32 to vector<8x1xf32>
      %30 = arith.mulf %20, %29 : vector<8x1xf32>
      %cst_19 = arith.constant 9.765625E-4 : f32
      %31 = vector.broadcast %cst_19 : f32 to vector<8x1xf32>
      %32 = arith.mulf %23, %31 : vector<8x1xf32>
      %33 = arith.mulf %30, %30 : vector<8x1xf32>
      %34 = arith.subf %32, %33 : vector<8x1xf32>
      %cst_20 = arith.constant 0.000000e+00 : f32
      %35 = vector.broadcast %cst_20 : f32 to vector<8x1xf32>
      %36 = arith.maximumf %34, %35 : vector<8x1xf32>
      %cst_21 = arith.constant 9.99999974E-6 : f32
      %37 = vector.broadcast %cst_21 : f32 to vector<8x1xf32>
      %38 = arith.addf %36, %37 : vector<8x1xf32>
      %39 = math.rsqrt %38 : vector<8x1xf32>
      %c0_22 = arith.constant 0 : index
      %c0_23 = arith.constant 0 : index
      %40 = vector.load %arg6[%c0_22, %c0_23] : memref<1x1xf32, #tpu.memory_space<vmem>>, vector<1x1xf32>
      %41 = vector.broadcast %40 : vector<1x1xf32> to vector<8x1xf32>
      %42 = arith.mulf %30, %41 : vector<8x1xf32>
      %43 = arith.subf %28, %42 : vector<8x1xf32>
      %44 = arith.mulf %39, %43 : vector<8x1xf32>
      %c0_24 = arith.constant 0 : index
      %c0_25 = arith.constant 0 : index
      %45 = vector.load %arg7[%c0_24, %c0_25] : memref<1x1xf32, #tpu.memory_space<vmem>>, vector<1x1xf32>
      %46 = vector.broadcast %45 : vector<1x1xf32> to vector<8x1xf32>
      %47 = arith.addf %44, %46 : vector<8x1xf32>
      %cst_26 = arith.constant 0.000000e+00 : f32
      %48 = vector.broadcast %cst_26 : f32 to vector<8x1xf32>
      %49 = arith.subf %48, %47 : vector<8x1xf32>
      %50 = math.exp %49 : vector<8x1xf32>
      %cst_27 = arith.constant 1.000000e+00 : f32
      %51 = vector.broadcast %cst_27 : f32 to vector<8x1xf32>
      %52 = arith.addf %51, %50 : vector<8x1xf32>
      %53 = tpu.reciprocal %52 {approx = true} : vector<8x1xf32> -> vector<8x1xf32>
      %c0_28 = arith.constant 0 : index
      %c0_29 = arith.constant 0 : index
      %54 = vector.load %arg8[%c0_28, %c0_29] : memref<8x1xf32, #tpu.memory_space<vmem>>, vector<8x1xf32>
      tpu.vector_store %arg8[%c0_28, %c0_29], %53 {strides = array<i32>} : memref<8x1xf32, #tpu.memory_space<vmem>>, vector<8x1xf32>,
    } else {
    }
    return
  }
  func.func @transform_0(%arg0: i32, %arg1: i32) -> (i32, i32) {
    %c0_i32 = arith.constant 0 : i32
    return %arg0, %arg1 : i32, i32
  }
  func.func @transform_1(%arg0: i32, %arg1: i32) -> (i32, i32) {
    %c0_i32 = arith.constant 0 : i32
    %c0_i32_0 = arith.constant 0 : i32
    return %arg1, %c0_i32 : i32, i32
  }
  func.func @transform_2(%arg0: i32, %arg1: i32) -> (i32, i32) {
    %c0_i32 = arith.constant 0 : i32
    %c0_i32_0 = arith.constant 0 : i32
    %c0_i32_1 = arith.constant 0 : i32
    return %c0_i32, %c0_i32_0 : i32, i32
  }
  func.func @transform_3(%arg0: i32, %arg1: i32) -> (i32, i32) {
    %c0_i32 = arith.constant 0 : i32
    %c0_i32_0 = arith.constant 0 : i32
    %c0_i32_1 = arith.constant 0 : i32
    return %c0_i32, %c0_i32_0 : i32, i32
  }
  func.func @transform_4(%arg0: i32, %arg1: i32) -> (i32, i32) {
    %c0_i32 = arith.constant 0 : i32
    %c0_i32_0 = arith.constant 0 : i32
    %c0_i32_1 = arith.constant 0 : i32
    return %c0_i32, %c0_i32_0 : i32, i32
  }
  func.func @transform_5(%arg0: i32, %arg1: i32) -> (i32, i32) {
    %c0_i32 = arith.constant 0 : i32
    %c0_i32_0 = arith.constant 0 : i32
    %c0_i32_1 = arith.constant 0 : i32
    return %c0_i32, %c0_i32_0 : i32, i32
  }
  func.func @transform_6(%arg0: i32, %arg1: i32) -> (i32, i32) {
    %c0_i32 = arith.constant 0 : i32
    %c0_i32_0 = arith.constant 0 : i32
    return %arg0, %c0_i32 : i32, i32
  }
}

</mosaic_0001>

<llo_original>
// kernel: tpu_custom_call.1
$region0: #{tpu_custom_call.1}
  #allocation0 [shape = 'u32[]', space=smem, size = 0x4, offset = 0x4, fixed_abs, tag = 'smem constant byte address 0x4 - core index']
  #allocation1 [shape = 'u32[144,128]{1,0:T(1,128)}', space=vmem, size = 0x12000, scoped, tag = 'internal scratch']
  #allocation2 [shape = 'f32[8,1024]{1,0:T(8,128)}', space=vmem, size = 0x8000, scoped, tag = 'scratch operand']
  #allocation3 [shape = 'f32[1,1]{1,0:T(1,128)S(1)}', space=vmem, size = 0x200, scoped, tag = 'scoped memory for tpu_custom_call.1']
  #allocation4 [shape = 'f32[1,1]{1,0:T(1,128)S(1)}', space=vmem, size = 0x200, scoped, tag = 'scoped memory for tpu_custom_call.1']
  %s0 = inlined_call_operand.hbm [shape: f32[16,32], index: 0, kind: input, shape index: {}]
  %s1 = inlined_call_operand.hbm [shape: bf16[32,1024], index: 1, kind: input, shape index: {}]
  %s2 = inlined_call_operand.vmem [shape: f32[1,1024], index: 2, kind: input, shape index: {}]
  %s3 = inlined_call_operand.vmem [shape: f32[1,1024], index: 3, kind: input, shape index: {}]
  %s4 = inlined_call_operand.<no memory space> [shape: f32[1,1], index: 4, kind: input, shape index: {}]
  %s5 = inlined_call_operand.<no memory space> [shape: f32[1,1], index: 5, kind: input, shape index: {}]
  %s6 = inlined_call_operand.vmem [shape: f32[16,1], index: 6, kind: output, shape index: {}]
  %s7 = sld [smem:[#allocation0]]
  $region77: #{tpu_custom_call.1} parent=0
    _
  %s9 = ssub.s32 1, %s7
  %s10 = scalar_select 0, %s9, %s7
  %v11 = vstv %s4
  %12 = vst [vmem:[#allocation3] sm:$0x1] %v11
  %v13 = vstv %s5
  %14 = vst [vmem:[#allocation4] sm:$0x1] %v13
  $region1: #{tpu_custom_call.1} parent=0
    #allocation5 [shape = 'u8[8192]{0}', space=vmem, size = 0x2000, scoped, tag = 'input window, operand 0']
    #allocation6 [shape = 's32[2]{0}', space=sflag, size = 0x8, scoped, tag = 'scoped memory for tpu_custom_call.1']
    #allocation7 [shape = 'u8[65536]{0}', space=vmem, size = 0x10000, scoped, tag = 'input window, operand 1, single buffered']
    #allocation8 [shape = 's32[1]{0}', space=sflag, size = 0x4, scoped, tag = 'scoped memory for tpu_custom_call.1']
    %15 = vsyncpa [#allocation6], 0
    %s16 = scalar_lea.sflag [#allocation6], 1
    %17 = vsyncpa %s16, 0
    %18 = vsyncpa [#allocation8], 0
    loop: start=0, step=1, limit=4
    $region2: #{tpu_custom_call.1} parent=1 // loop_pre_header
      _
    $region3: #{tpu_custom_call.1} parent=1 // loop_header
      %s20 = sphi 0, %s24
      %p21 = scmp.ge.s32.totalorder %s20, 4
      %s27 = sphi 0, %s39
      %s28 = sphi 0, %s35
      %s29 = sphi 0, %s27
      %s30 = sphi 0, %s28
      %s31 = sphi 0, %s29
      %s32 = sphi 0, %s30
      %s44 = sphi 0, %s46
      %s47 = sphi 0, %s44
      %s48 = sphi 0, %s47
      %s64 = sphi 0, %s48
      %s70 = sphi 0, %s72
      %s73 = sphi 0, %s70
      %s74 = sphi 0, %s73
      %s90 = sphi 0, %s74
      %s94 = sphi 0, %s94
      %s96 = sphi 0, %s94
      %s97 = sphi 0, %s96
      %s111 = sphi 0, %s97
      %s115 = sphi 0, %s115
      %s117 = sphi 0, %s115
      %s118 = sphi 0, %s117
      %s132 = sphi 0, %s118
      %s136 = sphi 0, %s136
      %s138 = sphi 0, %s136
      %s139 = sphi 0, %s138
      %s153 = sphi 0, %s139
      %s157 = sphi 0, %s157
      %s159 = sphi 0, %s157
      %s160 = sphi 0, %s159
      %s174 = sphi 0, %s160
      %s180 = sphi 0, %s182
      %s183 = sphi 0, %s180
      %s184 = sphi 0, %s183
      %s200 = sphi 0, %s184
    $region4: #{tpu_custom_call.1} parent=1 // loop_header_branch
      %23 = sbr.rel (%p21) target = $region8
    $region5: #{tpu_custom_call.1} parent=1 // loop_body
      %s25 = ssub.s32 %s20, 1
      %s26 = ssub.s32 %s20, 2
      %s33 = sadd.s32 1, %s28
      %p34 = scmp.ge.s32.totalorder %s33, 1
      %s35 = scalar_select %p34, 0, %s33
      %s36 = sadd.s32 1, %s27
      %s37 = scalar_select %p34, %s36, %s27
      %p38 = scmp.ge.s32.totalorder %s37, 2
      %s39 = scalar_select %p38, 0, %s37
      %s40 = ssub.s32 %s27, %s39
      %s41 = ssub.s32 %s28, %s35
      %s42 = sor.u32 %s40, %s41
      %p43 = scmp.eq.s32.totalorder %s42, 0
      %s45 = sadd.s32 %s44, 1
      %s46 = scalar_select %p43, %s44, %s45
      %p49 = pneg %p43
      %p50 = scmp.eq.s32.totalorder %s20, 1
      %p51 = por %p49, %p50
      %p52 = scmp.ne.s32.totalorder %s44, %s47
      %p53 = scmp.eq.s32.totalorder %s20, 0
      %p54 = por %p52, %p53
      %p55 = scmp.ne.s32.totalorder %s44, %s47
      %p56 = scmp.eq.s32.totalorder %s25, 1
      %p57 = por %p55, %p56
      %p58 = scmp.ne.s32.totalorder %s47, %s48
      %p59 = scmp.eq.s32.totalorder %s25, 0
      %p60 = por %p58, %p59
      %p61 = scmp.ne.s32.totalorder %s47, %s48
      %p62 = scmp.eq.s32.totalorder %s26, 1
      %p63 = por %p61, %p62
      %p65 = scmp.ne.s32.totalorder %s48, %s64
      %p66 = scmp.eq.s32.totalorder %s26, 0
      %p67 = por %p65, %p66
      %s68 = ssub.s32 %s28, %s35
      %p69 = scmp.eq.s32.totalorder %s68, 0
      %s71 = sadd.s32 %s70, 1
      %s72 = scalar_select %p69, %s70, %s71
      %p75 = pneg %p69
      %p76 = scmp.eq.s32.totalorder %s20, 1
      %p77 = por %p75, %p76
      %p78 = scmp.ne.s32.totalorder %s70, %s73
      %p79 = scmp.eq.s32.totalorder %s20, 0
      %p80 = por %p78, %p79
      %p81 = scmp.ne.s32.totalorder %s70, %s73
      %p82 = scmp.eq.s32.totalorder %s25, 1
      %p83 = por %p81, %p82
      %p84 = scmp.ne.s32.totalorder %s73, %s74
      %p85 = scmp.eq.s32.totalorder %s25, 0
      %p86 = por %p84, %p85
      %p87 = scmp.ne.s32.totalorder %s73, %s74
      %p88 = scmp.eq.s32.totalorder %s26, 1
      %p89 = por %p87, %p88
      %p91 = scmp.ne.s32.totalorder %s74, %s90
      %p92 = scmp.eq.s32.totalorder %s26, 0
      %p93 = por %p91, %p92
      %s95 = sadd.s32 %s94, 1
      %p98 = scmp.eq.s32.totalorder %s20, 1
      %p99 = scmp.ne.s32.totalorder %s94, %s96
      %p100 = scmp.eq.s32.totalorder %s20, 0
      %p101 = por %p99, %p100
      %p102 = scmp.ne.s32.totalorder %s94, %s96
      %p103 = scmp.eq.s32.totalorder %s25, 1
      %p104 = por %p102, %p103
      %p105 = scmp.ne.s32.totalorder %s96, %s97
      %p106 = scmp.eq.s32.totalorder %s25, 0
      %p107 = por %p105, %p106
      %p108 = scmp.ne.s32.totalorder %s96, %s97
      %p109 = scmp.eq.s32.totalorder %s26, 1
      %p110 = por %p108, %p109
      %p112 = scmp.ne.s32.totalorder %s97, %s111
      %p113 = scmp.eq.s32.totalorder %s26, 0
      %p114 = por %p112, %p113
      %s116 = sadd.s32 %s115, 1
      %p119 = scmp.eq.s32.totalorder %s20, 1
      %p120 = scmp.ne.s32.totalorder %s115, %s117
      %p121 = scmp.eq.s32.totalorder %s20, 0
      %p122 = por %p120, %p121
      %p123 = scmp.ne.s32.totalorder %s115, %s117
      %p124 = scmp.eq.s32.totalorder %s25, 1
      %p125 = por %p123, %p124
      %p126 = scmp.ne.s32.totalorder %s117, %s118
      %p127 = scmp.eq.s32.totalorder %s25, 0
      %p128 = por %p126, %p127
      %p129 = scmp.ne.s32.totalorder %s117, %s118
      %p130 = scmp.eq.s32.totalorder %s26, 1
      %p131 = por %p129, %p130
      %p133 = scmp.ne.s32.totalorder %s118, %s132
      %p134 = scmp.eq.s32.totalorder %s26, 0
      %p135 = por %p133, %p134
      %s137 = sadd.s32 %s136, 1
      %p140 = scmp.eq.s32.totalorder %s20, 1
      %p141 = scmp.ne.s32.totalorder %s136, %s138
      %p142 = scmp.eq.s32.totalorder %s20, 0
      %p143 = por %p141, %p142
      %p144 = scmp.ne.s32.totalorder %s136, %s138
      %p145 = scmp.eq.s32.totalorder %s25, 1
      %p146 = por %p144, %p145
      %p147 = scmp.ne.s32.totalorder %s138, %s139
      %p148 = scmp.eq.s32.totalorder %s25, 0
      %p149 = por %p147, %p148
      %p150 = scmp.ne.s32.totalorder %s138, %s139
      %p151 = scmp.eq.s32.totalorder %s26, 1
      %p152 = por %p150, %p151
      %p154 = scmp.ne.s32.totalorder %s139, %s153
      %p155 = scmp.eq.s32.totalorder %s26, 0
      %p156 = por %p154, %p155
      %s158 = sadd.s32 %s157, 1
      %p161 = scmp.eq.s32.totalorder %s20, 1
      %p162 = scmp.ne.s32.totalorder %s157, %s159
      %p163 = scmp.eq.s32.totalorder %s20, 0
      %p164 = por %p162, %p163
      %p165 = scmp.ne.s32.totalorder %s157, %s159
      %p166 = scmp.eq.s32.totalorder %s25, 1
      %p167 = por %p165, %p166
      %p168 = scmp.ne.s32.totalorder %s159, %s160
      %p169 = scmp.eq.s32.totalorder %s25, 0
      %p170 = por %p168, %p169
      %p171 = scmp.ne.s32.totalorder %s159, %s160
      %p172 = scmp.eq.s32.totalorder %s26, 1
      %p173 = por %p171, %p172
      %p175 = scmp.ne.s32.totalorder %s160, %s174
      %p176 = scmp.eq.s32.totalorder %s26, 0
      %p177 = por %p175, %p176
      %s178 = ssub.s32 %s27, %s39
      %p179 = scmp.eq.s32.totalorder %s178, 0
      %s181 = sadd.s32 %s180, 1
      %s182 = scalar_select %p179, %s180, %s181
      %p185 = pneg %p179
      %p186 = scmp.eq.s32.totalorder %s20, 1
      %p187 = por %p185, %p186
      %p188 = scmp.ne.s32.totalorder %s180, %s183
      %p189 = scmp.eq.s32.totalorder %s20, 0
      %p190 = por %p188, %p189
      %p191 = scmp.ne.s32.totalorder %s180, %s183
      %p192 = scmp.eq.s32.totalorder %s25, 1
      %p193 = por %p191, %p192
      %p194 = scmp.ne.s32.totalorder %s183, %s184
      %p195 = scmp.eq.s32.totalorder %s25, 0
      %p196 = por %p194, %p195
      %p197 = scmp.ne.s32.totalorder %s183, %s184
      %p198 = scmp.eq.s32.totalorder %s26, 1
      %p199 = por %p197, %p198
      %p201 = scmp.ne.s32.totalorder %s184, %s200
      %p202 = scmp.eq.s32.totalorder %s26, 0
      %p203 = por %p201, %p202
      %p204 = scmp.le.s32.totalorder 1, %s20
      %p205 = scmp.lt.s32.totalorder %s20, 3
      %p206 = pnand %p204, %p205
      %p207 = pneg %p206
      // Predicated region
      $region9: #{tpu_custom_call.1} parent=5 // pred_check
        _
      $region10: #{tpu_custom_call.1} parent=5 // pred_check_branch
        %209 = sbr.rel (%p206) target = $region12
      $region11: #{tpu_custom_call.1} parent=5 // pred_region
        %s210 = ssub.s32 %s20, 1
        // Predicated region
        $region13: #{tpu_custom_call.1} parent=11 // pred_check
          %p211 = pneg %p86
        $region14: #{tpu_custom_call.1} parent=11 // pred_check_branch
          %213 = sbr.rel (%p211) target = $region16
        $region15: #{tpu_custom_call.1} parent=11 // pred_region
          %s214 = smul.u32 4, %s30
          %s216 = ssub.s32 2048, 2048
          %217 = vsyncadd [#allocation8], %s216
          %s218 = smul.addr %s214, 8
          %s219 = smul.addr %s218, 64
          %s220 = scalar_lea.hbm %s1, %s219
          %s221 = sshll.u32 [#allocation7], 4
          %s222 = int_to_ptr.vmem [resolvable:$true] %s221
          %227 = dma.hbm_to_vmem [thread:$0]  %s220, 2048, %s222, [#allocation8], 512, 512, 32
        $region16: #{tpu_custom_call.1} parent=11 // pred_fallthru
          _
        // Predicated region
        $region17: #{tpu_custom_call.1} parent=11 // pred_check
          %p228 = pneg %p107
        $region18: #{tpu_custom_call.1} parent=11 // pred_check_branch
          %230 = sbr.rel (%p228) target = $region20
        $region19: #{tpu_custom_call.1} parent=11 // pred_region
          _
        $region20: #{tpu_custom_call.1} parent=11 // pred_fallthru
          _
        // Predicated region
        $region21: #{tpu_custom_call.1} parent=11 // pred_check
          %p231 = pneg %p128
        $region22: #{tpu_custom_call.1} parent=11 // pred_check_branch
          %233 = sbr.rel (%p231) target = $region24
        $region23: #{tpu_custom_call.1} parent=11 // pred_region
          _
        $region24: #{tpu_custom_call.1} parent=11 // pred_fallthru
          _
        // Predicated region
        $region25: #{tpu_custom_call.1} parent=11 // pred_check
          %p234 = pneg %p149
        $region26: #{tpu_custom_call.1} parent=11 // pred_check_branch
          %236 = sbr.rel (%p234) target = $region28
        $region27: #{tpu_custom_call.1} parent=11 // pred_region
          _
        $region28: #{tpu_custom_call.1} parent=11 // pred_fallthru
          _
        // Predicated region
        $region29: #{tpu_custom_call.1} parent=11 // pred_check
          %p237 = pneg %p170
        $region30: #{tpu_custom_call.1} parent=11 // pred_check_branch
          %239 = sbr.rel (%p237) target = $region32
        $region31: #{tpu_custom_call.1} parent=11 // pred_region
          _
        $region32: #{tpu_custom_call.1} parent=11 // pred_fallthru
          _
      $region12: #{tpu_custom_call.1} parent=5 // pred_fallthru
        _
      %p240 = scmp.lt.s32.totalorder %s20, 2
      // Predicated region
      $region33: #{tpu_custom_call.1} parent=5 // pred_check
        %p241 = pneg %p240
      $region34: #{tpu_custom_call.1} parent=5 // pred_check_branch
        %243 = sbr.rel (%p241) target = $region36
      $region35: #{tpu_custom_call.1} parent=5 // pred_region
        // Predicated region
        $region37: #{tpu_custom_call.1} parent=35 // pred_check
          %p244 = pneg %p54
        $region38: #{tpu_custom_call.1} parent=35 // pred_check_branch
          %246 = sbr.rel (%p244) target = $region40
        $region39: #{tpu_custom_call.1} parent=35 // pred_region
          %s247 = sand.u32 %s44, 1
          %s248 = scalar_lea.sflag [#allocation6], %s247
          %s249 = sand.u32 %s44, 1
          %s250 = smul.addr %s249, 8
          %s251 = scalar_lea.vmem [#allocation5], %s250
          %s253 = ssub.s32 128, 128
          %254 = vsyncadd %s248, %s253
          %s255 = sadd.s32 %s28, %s27
          %s256 = smul.addr %s255, 128
          %s257 = scalar_lea.hbm %s0, %s256
          %s259 = sshll.u32 %s251, 4
          %s260 = int_to_ptr.vmem [resolvable:$true] %s259
          %262 = dma.hbm_to_vmem [thread:$0]  %s257, 128, %s260, %s248
        $region40: #{tpu_custom_call.1} parent=35 // pred_fallthru
          _
      $region36: #{tpu_custom_call.1} parent=5 // pred_fallthru
        _
      %p263 = scmp.le.s32.totalorder 1, %s20
      %p264 = scmp.lt.s32.totalorder %s20, 3
      %p265 = pnand %p263, %p264
      %p266 = pneg %p265
      // Predicated region
      $region41: #{tpu_custom_call.1} parent=5 // pred_check
        _
      $region42: #{tpu_custom_call.1} parent=5 // pred_check_branch
        %268 = sbr.rel (%p265) target = $region44
      $region43: #{tpu_custom_call.1} parent=5 // pred_region
        %s269 = ssub.s32 %s20, 1
        %s270 = sand.u32 %s47, 1
        %s271 = scalar_lea.sflag [#allocation6], %s270
        %s272 = sand.u32 %s47, 1
        %s273 = smul.addr %s272, 8
        %s274 = scalar_lea.vmem [#allocation5], %s273
        // Predicated region
        $region45: #{tpu_custom_call.1} parent=43 // pred_check
          %p275 = pneg %p60
        $region46: #{tpu_custom_call.1} parent=43 // pred_check_branch
          %277 = sbr.rel (%p275) target = $region48
        $region47: #{tpu_custom_call.1} parent=43 // pred_region
          %278 = dma.done %s271, 128
        $region48: #{tpu_custom_call.1} parent=43 // pred_fallthru
          _
        // Predicated region
        $region49: #{tpu_custom_call.1} parent=43 // pred_check
          %p279 = pneg %p86
        $region50: #{tpu_custom_call.1} parent=43 // pred_check_branch
          %281 = sbr.rel (%p279) target = $region52
        $region51: #{tpu_custom_call.1} parent=43 // pred_region
          %282 = dma.done [#allocation8], 2048
        $region52: #{tpu_custom_call.1} parent=43 // pred_fallthru
          _
        %s283 = sand.u32 %s47, 1
        %s284 = scalar_lea.sflag [#allocation6], %s283
        %s285 = sand.u32 %s47, 1
        %s286 = smul.addr %s285, 8
        %s287 = scalar_lea.vmem [#allocation5], %s286
        %p288 = pneg %p60
        %p289 = pneg %p57
        %p290 = pneg %p86
        %p291 = pneg %p83
        %p292 = pneg %p107
        %p293 = pneg %p104
        %p294 = pneg %p128
        %p295 = pneg %p125
        %p296 = pneg %p149
        %p297 = pneg %p146
        %p298 = pneg %p170
        %p299 = pneg %p167
        %p300 = pneg %p196
        %p301 = pneg %p193
        %p302 = scmp.lt.s32.totalorder %s29, 1
        %s303 = scalar_select %p302, %s29, 1
        %s304 = smul.addr %s303, 8
        %s305 = scalar_lea.vmem %s6, %s304
        %s306 = smul.u32 4, %s30
        %p307 = scmp.lt.s32.totalorder %s29, 1
        %s308 = scalar_select %p307, %s29, 1
        %s309 = smul.addr %s308, 8
        %s310 = scalar_lea.vmem %s6, %s309
        %v312 = vld [vmem:[%s274] sm:$0xff]
        %v313 = vpack.c.bf16 %v312, %v312
        %v314 = vld [vmem:[#allocation7] sm:$0xff]
        %v315 = vld [vmem:[#allocation7 + $0x8] sm:$0xff]
        %v316 = vld [vmem:[#allocation7 + $0x10] sm:$0xff]
        %v317 = vld [vmem:[#allocation7 + $0x18] sm:$0xff]
        %v318 = vld [vmem:[#allocation7 + $0x20] sm:$0xff]
        %v319 = vld [vmem:[#allocation7 + $0x28] sm:$0xff]
        %v320 = vld [vmem:[#allocation7 + $0x30] sm:$0xff]
        %v321 = vld [vmem:[#allocation7 + $0x38] sm:$0xff]
        %v322 = vld [vmem:[#allocation7 + $0x40] sm:$0xff]
        %v323 = vld [vmem:[#allocation7 + $0x48] sm:$0xff]
        %v324 = vld [vmem:[#allocation7 + $0x50] sm:$0xff]
        %v325 = vld [vmem:[#allocation7 + $0x58] sm:$0xff]
        %v326 = vld [vmem:[#allocation7 + $0x60] sm:$0xff]
        %v327 = vld [vmem:[#allocation7 + $0x68] sm:$0xff]
        %v328 = vld [vmem:[#allocation7 + $0x70] sm:$0xff]
        %v329 = vld [vmem:[#allocation7 + $0x78] sm:$0xff]
        %v346 = vunpack.c.l.b16 %v314
        %v347 = vunpack.c.h.b16 %v314
        %v348 = vunpack.c.l.b16 %v315
        %v349 = vunpack.c.h.b16 %v315
        %v350 = vunpack.c.l.b16 %v316
        %v351 = vunpack.c.h.b16 %v316
        %v352 = vunpack.c.l.b16 %v317
        %v353 = vunpack.c.h.b16 %v317
        %v354 = vunpack.c.l.b16 %v318
        %v355 = vunpack.c.h.b16 %v318
        %v356 = vunpack.c.l.b16 %v319
        %v357 = vunpack.c.h.b16 %v319
        %v358 = vunpack.c.l.b16 %v320
        %v359 = vunpack.c.h.b16 %v320
        %v360 = vunpack.c.l.b16 %v321
        %v361 = vunpack.c.h.b16 %v321
        %v362 = vunpack.c.l.b16 %v322
        %v363 = vunpack.c.h.b16 %v322
        %v364 = vunpack.c.l.b16 %v323
        %v365 = vunpack.c.h.b16 %v323
        %v366 = vunpack.c.l.b16 %v324
        %v367 = vunpack.c.h.b16 %v324
        %v368 = vunpack.c.l.b16 %v325
        %v369 = vunpack.c.h.b16 %v325
        %v370 = vunpack.c.l.b16 %v326
        %v371 = vunpack.c.h.b16 %v326
        %v372 = vunpack.c.l.b16 %v327
        %v373 = vunpack.c.h.b16 %v327
        %v374 = vunpack.c.l.b16 %v328
        %v375 = vunpack.c.h.b16 %v328
        %v376 = vunpack.c.l.b16 %v329
        %v377 = vunpack.c.h.b16 %v329
        %v378 = vpack.c.b16 %v354, %v346
        %v379 = vpack.c.b16 %v355, %v347
        %v380 = vpack.c.b16 %v356, %v348
        %v381 = vpack.c.b16 %v357, %v349
        %v382 = vpack.c.b16 %v358, %v350
        %v383 = vpack.c.b16 %v359, %v351
        %v384 = vpack.c.b16 %v360, %v352
        %v385 = vpack.c.b16 %v361, %v353
        %v386 = vpack.c.b16 %v370, %v362
        %v387 = vpack.c.b16 %v371, %v363
        %v388 = vpack.c.b16 %v372, %v364
        %v389 = vpack.c.b16 %v373, %v365
        %v390 = vpack.c.b16 %v374, %v366
        %v391 = vpack.c.b16 %v375, %v367
        %v392 = vpack.c.b16 %v376, %v368
        %v393 = vpack.c.b16 %v377, %v369
        %vm410 = vcmask 261120
        %v412 = vsel %vm410, %v313, 0
        %414 = vmatprep.subr.bf16.mxu0 %v379
        %415 = vmatpush1.bf16.msra.mxu0 %v378
        %416 = vmatprep.subr.bf16.mxu0 %v387
        %417 = vmatpush1.bf16.msra.mxu0 %v386
        %418 = vmatprep.subr.bf16.mxu0 0
        %419 = vmatpush1.bf16.msra.mxu0 0
        %420 = vmatprep.subr.bf16.mxu0 0
        %421 = vmatpush1.bf16.msra.mxu0 0
        %422 = vmatprep.subr.bf16.mxu0 0
        %423 = vmatpush1.bf16.msra.mxu0 0
        %424 = vmatprep.subr.bf16.mxu0 0
        %425 = vmatpush1.bf16.msra.mxu0 0
        %426 = vmatprep.subr.bf16.mxu0 0
        %427 = vmatpush1.bf16.msra.mxu0 0
        %428 = vmatprep.subr.bf16.mxu0 0
        %429 = vmatpush1.bf16.msra.mxu0 0
        %430 = vmatprep.subr.bf16.mxu0 0
        %431 = vmatpush1.bf16.msra.mxu0 0
        %432 = vmatprep.subr.bf16.mxu0 0
        %433 = vmatpush1.bf16.msra.mxu0 0
        %434 = vmatprep.subr.bf16.mxu0 0
        %435 = vmatpush1.bf16.msra.mxu0 0
        %436 = vmatprep.subr.bf16.mxu0 0
        %437 = vmatpush1.bf16.msra.mxu0 0
        %438 = vmatprep.subr.bf16.mxu0 0
        %439 = vmatpush1.bf16.msra.mxu0 0
        %440 = vmatprep.subr.bf16.mxu0 0
        %441 = vmatpush1.bf16.msra.mxu0 0
        %442 = vmatprep.subr.bf16.mxu0 0
        %443 = vmatpush1.bf16.msra.mxu0 0
        %444 = vmatprep.subr.bf16.mxu0 0
        %445 = vmatpush1.bf16.msra.mxu0 0
        %446 = vmatprep.mubr.bf16.mxu0 0
        %447 = vmatmul.mubr.bf16.gmra.mrb[0].mxu0 %v412
        %v448 = vpop.f32.mrb[0].mxu0
        %v449 = vadd.f32 0.0, %v448
        %v450 = vpop.f32.mrb[0].mxu0
        %v451 = vadd.f32 0.0, %v450
        %v452 = vpop.f32.mrb[0].mxu0
        %v453 = vpop.f32.mrb[0].mxu0
        %454 = vdwg.mxu0
        %455 = vmatprep.subr.bf16.mxu0 %v381
        %456 = vmatpush1.bf16.msra.mxu0 %v380
        %457 = vmatprep.subr.bf16.mxu0 %v389
        %458 = vmatpush1.bf16.msra.mxu0 %v388
        %459 = vmatprep.subr.bf16.mxu0 0
        %460 = vmatpush1.bf16.msra.mxu0 0
        %461 = vmatprep.subr.bf16.mxu0 0
        %462 = vmatpush1.bf16.msra.mxu0 0
        %463 = vmatprep.subr.bf16.mxu0 0
        %464 = vmatpush1.bf16.msra.mxu0 0
        %465 = vmatprep.subr.bf16.mxu0 0
        %466 = vmatpush1.bf16.msra.mxu0 0
        %467 = vmatprep.subr.bf16.mxu0 0
        %468 = vmatpush1.bf16.msra.mxu0 0
        %469 = vmatprep.subr.bf16.mxu0 0
        %470 = vmatpush1.bf16.msra.mxu0 0
        %471 = vmatprep.subr.bf16.mxu0 0
        %472 = vmatpush1.bf16.msra.mxu0 0
        %473 = vmatprep.subr.bf16.mxu0 0
        %474 = vmatpush1.bf16.msra.mxu0 0
        %475 = vmatprep.subr.bf16.mxu0 0
        %476 = vmatpush1.bf16.msra.mxu0 0
        %477 = vmatprep.subr.bf16.mxu0 0
        %478 = vmatpush1.bf16.msra.mxu0 0
        %479 = vmatprep.subr.bf16.mxu0 0
        %480 = vmatpush1.bf16.msra.mxu0 0
        %481 = vmatprep.subr.bf16.mxu0 0
        %482 = vmatpush1.bf16.msra.mxu0 0
        %483 = vmatprep.subr.bf16.mxu0 0
        %484 = vmatpush1.bf16.msra.mxu0 0
        %485 = vmatprep.subr.bf16.mxu0 0
        %486 = vmatpush1.bf16.msra.mxu0 0
        %487 = vmatprep.mubr.bf16.mxu0 0
        %488 = vmatmul.mubr.bf16.gmra.mrb[0].mxu0 %v412
        %v489 = vpop.f32.mrb[0].mxu0
        %v490 = vadd.f32 0.0, %v489
        %v491 = vpop.f32.mrb[0].mxu0
        %v492 = vadd.f32 0.0, %v491
        %v493 = vpop.f32.mrb[0].mxu0
        %v494 = vpop.f32.mrb[0].mxu0
        %495 = vdwg.mxu0
        %496 = vmatprep.subr.bf16.mxu0 %v383
        %497 = vmatpush1.bf16.msra.mxu0 %v382
        %498 = vmatprep.subr.bf16.mxu0 %v391
        %499 = vmatpush1.bf16.msra.mxu0 %v390
        %500 = vmatprep.subr.bf16.mxu0 0
        %501 = vmatpush1.bf16.msra.mxu0 0
        %502 = vmatprep.subr.bf16.mxu0 0
        %503 = vmatpush1.bf16.msra.mxu0 0
        %504 = vmatprep.subr.bf16.mxu0 0
        %505 = vmatpush1.bf16.msra.mxu0 0
        %506 = vmatprep.subr.bf16.mxu0 0
        %507 = vmatpush1.bf16.msra.mxu0 0
        %508 = vmatprep.subr.bf16.mxu0 0
        %509 = vmatpush1.bf16.msra.mxu0 0
        %510 = vmatprep.subr.bf16.mxu0 0
        %511 = vmatpush1.bf16.msra.mxu0 0
        %512 = vmatprep.subr.bf16.mxu0 0
        %513 = vmatpush1.bf16.msra.mxu0 0
        %514 = vmatprep.subr.bf16.mxu0 0
        %515 = vmatpush1.bf16.msra.mxu0 0
        %516 = vmatprep.subr.bf16.mxu0 0
        %517 = vmatpush1.bf16.msra.mxu0 0
        %518 = vmatprep.subr.bf16.mxu0 0
        %519 = vmatpush1.bf16.msra.mxu0 0
        %520 = vmatprep.subr.bf16.mxu0 0
        %521 = vmatpush1.bf16.msra.mxu0 0
        %522 = vmatprep.subr.bf16.mxu0 0
        %523 = vmatpush1.bf16.msra.mxu0 0
        %524 = vmatprep.subr.bf16.mxu0 0
        %525 = vmatpush1.bf16.msra.mxu0 0
        %526 = vmatprep.subr.bf16.mxu0 0
        %527 = vmatpush1.bf16.msra.mxu0 0
        %528 = vmatprep.mubr.bf16.mxu0 0
        %529 = vmatmul.mubr.bf16.gmra.mrb[0].mxu0 %v412
        %v530 = vpop.f32.mrb[0].mxu0
        %v531 = vadd.f32 0.0, %v530
        %v532 = vpop.f32.mrb[0].mxu0
        %v533 = vadd.f32 0.0, %v532
        %v534 = vpop.f32.mrb[0].mxu0
        %v535 = vpop.f32.mrb[0].mxu0
        %536 = vdwg.mxu0
        %537 = vmatprep.subr.bf16.mxu0 %v385
        %538 = vmatpush1.bf16.msra.mxu0 %v384
        %539 = vmatprep.subr.bf16.mxu0 %v393
        %540 = vmatpush1.bf16.msra.mxu0 %v392
        %541 = vmatprep.subr.bf16.mxu0 0
        %542 = vmatpush1.bf16.msra.mxu0 0
        %543 = vmatprep.subr.bf16.mxu0 0
        %544 = vmatpush1.bf16.msra.mxu0 0
        %545 = vmatprep.subr.bf16.mxu0 0
        %546 = vmatpush1.bf16.msra.mxu0 0
        %547 = vmatprep.subr.bf16.mxu0 0
        %548 = vmatpush1.bf16.msra.mxu0 0
        %549 = vmatprep.subr.bf16.mxu0 0
        %550 = vmatpush1.bf16.msra.mxu0 0
        %551 = vmatprep.subr.bf16.mxu0 0
        %552 = vmatpush1.bf16.msra.mxu0 0
        %553 = vmatprep.subr.bf16.mxu0 0
        %554 = vmatpush1.bf16.msra.mxu0 0
        %555 = vmatprep.subr.bf16.mxu0 0
        %556 = vmatpush1.bf16.msra.mxu0 0
        %557 = vmatprep.subr.bf16.mxu0 0
        %558 = vmatpush1.bf16.msra.mxu0 0
        %559 = vmatprep.subr.bf16.mxu0 0
        %560 = vmatpush1.bf16.msra.mxu0 0
        %561 = vmatprep.subr.bf16.mxu0 0
        %562 = vmatpush1.bf16.msra.mxu0 0
        %563 = vmatprep.subr.bf16.mxu0 0
        %564 = vmatpush1.bf16.msra.mxu0 0
        %565 = vmatprep.subr.bf16.mxu0 0
        %566 = vmatpush1.bf16.msra.mxu0 0
        %567 = vmatprep.subr.bf16.mxu0 0
        %568 = vmatpush1.bf16.msra.mxu0 0
        %569 = vmatprep.mubr.bf16.mxu0 0
        %570 = vmatmul.mubr.bf16.gmra.mrb[0].mxu0 %v412
        %v571 = vpop.f32.mrb[0].mxu0
        %v572 = vadd.f32 0.0, %v571
        %v573 = vpop.f32.mrb[0].mxu0
        %v574 = vadd.f32 0.0, %v573
        %v575 = vpop.f32.mrb[0].mxu0
        %v576 = vpop.f32.mrb[0].mxu0
        %577 = vdwg.mxu0
        %p578 = scmp.eq.s32.totalorder %s30, 0
        // Predicated region
        $region53: #{tpu_custom_call.1} parent=43 // pred_check
          %p579 = pneg %p578
        $region54: #{tpu_custom_call.1} parent=43 // pred_check_branch
          %581 = sbr.rel (%p579) target = $region56
        $region55: #{tpu_custom_call.1} parent=43 // pred_region
          %582 = vst [vmem:[#allocation2] sm:$0xff] %v449
          %583 = vst [vmem:[#allocation2 + $0x8] sm:$0xff] %v451
          %584 = vst [vmem:[#allocation2 + $0x10] sm:$0xff] %v490
          %585 = vst [vmem:[#allocation2 + $0x18] sm:$0xff] %v492
          %586 = vst [vmem:[#allocation2 + $0x20] sm:$0xff] %v531
          %587 = vst [vmem:[#allocation2 + $0x28] sm:$0xff] %v533
          %588 = vst [vmem:[#allocation2 + $0x30] sm:$0xff] %v572
          %589 = vst [vmem:[#allocation2 + $0x38] sm:$0xff] %v574
        $region56: #{tpu_custom_call.1} parent=43 // pred_fallthru
          _
        %p590 = scmp.ne.s32.totalorder %s30, 0
        // Predicated region
        $region57: #{tpu_custom_call.1} parent=43 // pred_check
          %p591 = pneg %p590
        $region58: #{tpu_custom_call.1} parent=43 // pred_check_branch
          %593 = sbr.rel (%p591) target = $region60
        $region59: #{tpu_custom_call.1} parent=43 // pred_region
          %v594 = vld [vmem:[#allocation2] sm:$0xff]
          %v595 = vld [vmem:[#allocation2 + $0x8] sm:$0xff]
          %v596 = vld [vmem:[#allocation2 + $0x10] sm:$0xff]
          %v597 = vld [vmem:[#allocation2 + $0x18] sm:$0xff]
          %v598 = vld [vmem:[#allocation2 + $0x20] sm:$0xff]
          %v599 = vld [vmem:[#allocation2 + $0x28] sm:$0xff]
          %v600 = vld [vmem:[#allocation2 + $0x30] sm:$0xff]
          %v601 = vld [vmem:[#allocation2 + $0x38] sm:$0xff]
          %v602 = vadd.f32 %v594, %v449
          %v603 = vadd.f32 %v595, %v451
          %v604 = vadd.f32 %v596, %v490
          %v605 = vadd.f32 %v597, %v492
          %v606 = vadd.f32 %v598, %v531
          %v607 = vadd.f32 %v599, %v533
          %v608 = vadd.f32 %v600, %v572
          %v609 = vadd.f32 %v601, %v574
          %610 = vst [vmem:[#allocation2] sm:$0xff] %v602
          %611 = vst [vmem:[#allocation2 + $0x8] sm:$0xff] %v603
          %612 = vst [vmem:[#allocation2 + $0x10] sm:$0xff] %v604
          %613 = vst [vmem:[#allocation2 + $0x18] sm:$0xff] %v605
          %614 = vst [vmem:[#allocation2 + $0x20] sm:$0xff] %v606
          %615 = vst [vmem:[#allocation2 + $0x28] sm:$0xff] %v607
          %616 = vst [vmem:[#allocation2 + $0x30] sm:$0xff] %v608
          %617 = vst [vmem:[#allocation2 + $0x38] sm:$0xff] %v609
        $region60: #{tpu_custom_call.1} parent=43 // pred_fallthru
          _
        // Predicated region
        $region61: #{tpu_custom_call.1} parent=43 // pred_check
          %p618 = pneg %p578
        $region62: #{tpu_custom_call.1} parent=43 // pred_check_branch
          %620 = sbr.rel (%p618) target = $region64
        $region63: #{tpu_custom_call.1} parent=43 // pred_region
          %v621 = vld [vmem:[#allocation2] sm:$0xff]
          %v622 = vld [vmem:[#allocation2 + $0x8] sm:$0xff]
          %v623 = vld [vmem:[#allocation2 + $0x10] sm:$0xff]
          %v624 = vld [vmem:[#allocation2 + $0x18] sm:$0xff]
          %v625 = vld [vmem:[#allocation2 + $0x20] sm:$0xff]
          %v626 = vld [vmem:[#allocation2 + $0x28] sm:$0xff]
          %v627 = vld [vmem:[#allocation2 + $0x30] sm:$0xff]
          %v628 = vld [vmem:[#allocation2 + $0x38] sm:$0xff]
          %v629 = vld [vmem:[%s2] sm:$0xff]
          %v631 = vlaneseq
          %v632 = vshrl.u32 %v631, 7
          %v633 = vsub.s32 0, %v632
          %v634 = vrot.slane %v629, %v633
          %v635 = vlaneseq
          %v636 = vshrl.u32 %v635, 7
          %v637 = vsub.s32 1, %v636
          %v638 = vrot.slane %v629, %v637
          %v639 = vlaneseq
          %v640 = vshrl.u32 %v639, 7
          %v641 = vsub.s32 2, %v640
          %v642 = vrot.slane %v629, %v641
          %v643 = vlaneseq
          %v644 = vshrl.u32 %v643, 7
          %v645 = vsub.s32 3, %v644
          %v646 = vrot.slane %v629, %v645
          %v647 = vlaneseq
          %v648 = vshrl.u32 %v647, 7
          %v649 = vsub.s32 4, %v648
          %v650 = vrot.slane %v629, %v649
          %v651 = vlaneseq
          %v652 = vshrl.u32 %v651, 7
          %v653 = vsub.s32 5, %v652
          %v654 = vrot.slane %v629, %v653
          %v655 = vlaneseq
          %v656 = vshrl.u32 %v655, 7
          %v657 = vsub.s32 6, %v656
          %v658 = vrot.slane %v629, %v657
          %v659 = vlaneseq
          %v660 = vshrl.u32 %v659, 7
          %v661 = vsub.s32 7, %v660
          %v662 = vrot.slane %v629, %v661
          %v671 = vadd.f32 %v621, %v634
          %v672 = vadd.f32 %v622, %v638
          %v673 = vadd.f32 %v623, %v642
          %v674 = vadd.f32 %v624, %v646
          %v675 = vadd.f32 %v625, %v650
          %v676 = vadd.f32 %v626, %v654
          %v677 = vadd.f32 %v627, %v658
          %v678 = vadd.f32 %v628, %v662
          %v679 = vmax.f32 %v671, 0.0
          %v680 = vmax.f32 %v672, 0.0
          %v681 = vmax.f32 %v673, 0.0
          %v682 = vmax.f32 %v674, 0.0
          %v683 = vmax.f32 %v675, 0.0
          %v684 = vmax.f32 %v676, 0.0
          %v685 = vmax.f32 %v677, 0.0
          %v686 = vmax.f32 %v678, 0.0
          %v687 = vadd.f32 %v679, %v680
          %v688 = vadd.f32 %v687, %v681
          %v689 = vadd.f32 %v688, %v682
          %v690 = vadd.f32 %v689, %v683
          %v691 = vadd.f32 %v690, %v684
          %v692 = vadd.f32 %v691, %v685
          %v693 = vadd.f32 %v692, %v686
          %694 = vadd.xlane.f32.xlu0 %v693
          %v695 = vpop.xlane.xlu0 %694
          %v696 = vmul.f32 %v679, %v679
          %v697 = vmul.f32 %v680, %v680
          %v698 = vmul.f32 %v681, %v681
          %v699 = vmul.f32 %v682, %v682
          %v700 = vmul.f32 %v683, %v683
          %v701 = vmul.f32 %v684, %v684
          %v702 = vmul.f32 %v685, %v685
          %v703 = vmul.f32 %v686, %v686
          %v704 = vadd.f32 %v696, %v697
          %v705 = vadd.f32 %v704, %v698
          %v706 = vadd.f32 %v705, %v699
          %v707 = vadd.f32 %v706, %v700
          %v708 = vadd.f32 %v707, %v701
          %v709 = vadd.f32 %v708, %v702
          %v710 = vadd.f32 %v709, %v703
          %711 = vadd.xlane.f32.xlu0 %v710
          %v712 = vpop.xlane.xlu0 %711
          %v713 = vld [vmem:[%s3] sm:$0xff]
          %v715 = vlaneseq
          %v716 = vshrl.u32 %v715, 7
          %v717 = vsub.s32 0, %v716
          %v718 = vrot.slane %v713, %v717
          %v719 = vlaneseq
          %v720 = vshrl.u32 %v719, 7
          %v721 = vsub.s32 1, %v720
          %v722 = vrot.slane %v713, %v721
          %v723 = vlaneseq
          %v724 = vshrl.u32 %v723, 7
          %v725 = vsub.s32 2, %v724
          %v726 = vrot.slane %v713, %v725
          %v727 = vlaneseq
          %v728 = vshrl.u32 %v727, 7
          %v729 = vsub.s32 3, %v728
          %v730 = vrot.slane %v713, %v729
          %v731 = vlaneseq
          %v732 = vshrl.u32 %v731, 7
          %v733 = vsub.s32 4, %v732
          %v734 = vrot.slane %v713, %v733
          %v735 = vlaneseq
          %v736 = vshrl.u32 %v735, 7
          %v737 = vsub.s32 5, %v736
          %v738 = vrot.slane %v713, %v737
          %v739 = vlaneseq
          %v740 = vshrl.u32 %v739, 7
          %v741 = vsub.s32 6, %v740
          %v742 = vrot.slane %v713, %v741
          %v743 = vlaneseq
          %v744 = vshrl.u32 %v743, 7
          %v745 = vsub.s32 7, %v744
          %v746 = vrot.slane %v713, %v745
          %v755 = vmul.f32 %v679, %v718
          %v756 = vmul.f32 %v680, %v722
          %v757 = vmul.f32 %v681, %v726
          %v758 = vmul.f32 %v682, %v730
          %v759 = vmul.f32 %v683, %v734
          %v760 = vmul.f32 %v684, %v738
          %v761 = vmul.f32 %v685, %v742
          %v762 = vmul.f32 %v686, %v746
          %v763 = vadd.f32 %v755, %v756
          %v764 = vadd.f32 %v763, %v757
          %v765 = vadd.f32 %v764, %v758
          %v766 = vadd.f32 %v765, %v759
          %v767 = vadd.f32 %v766, %v760
          %v768 = vadd.f32 %v767, %v761
          %v769 = vadd.f32 %v768, %v762
          %770 = vadd.xlane.f32.xlu0 %v769
          %v771 = vpop.xlane.xlu0 %770
          %v772 = vmul.f32 %v695, 0.0009765625
          %v773 = vmul.f32 %v712, 0.0009765625
          %v774 = vmul.f32 %v772, %v772
          %v775 = vsub.f32 %v773, %v774
          %v776 = vmax.f32 %v775, 0.0
          %v777 = vadd.f32 %v776, 1e-05
          %v778 = vrsqrt.pop %v777
          %v779 = vld [vmem:[#allocation3] sm:$0x1]
          %v781 = vlaneseq
          %v782 = vshrl.u32 %v781, 7
          %v783 = vsub.s32 0, %v782
          %v784 = vrot.slane %v779, %v783
          %v786 = vmul.f32 %v772, %v784
          %v787 = vsub.f32 %v771, %v786
          %v788 = vmul.f32 %v778, %v787
          %v789 = vld [vmem:[#allocation4] sm:$0x1]
          %v791 = vlaneseq
          %v792 = vshrl.u32 %v791, 7
          %v793 = vsub.s32 0, %v792
          %v794 = vrot.slane %v789, %v793
          %v796 = vadd.f32 %v788, %v794
          %v797 = vsub.f32 0.0, %v796
          %v798 = vmul.f32 %v797, 1.442695
          %v799 = vpow.pop %v798
          %v800 = vadd.f32 %v799, 1.0
          %v801 = vrcp.pop %v800
          %vm802 = vcmask 7168
          %803 = vst.msk [vmem:[%s310] sm:$0xff] %vm802, %v801
        $region64: #{tpu_custom_call.1} parent=43 // pred_fallthru
          _
        %p804 = scmp.lt.s32.totalorder %s29, 1
        %s805 = scalar_select %p804, %s29, 1
        %s806 = smul.addr %s805, 8
        %s807 = scalar_lea.vmem %s6, %s806
        // Predicated region
        $region65: #{tpu_custom_call.1} parent=43 // pred_check
          %p808 = pneg %p193
        $region66: #{tpu_custom_call.1} parent=43 // pred_check_branch
          %810 = sbr.rel (%p808) target = $region68
        $region67: #{tpu_custom_call.1} parent=43 // pred_region
          _
        $region68: #{tpu_custom_call.1} parent=43 // pred_fallthru
          _
      $region44: #{tpu_custom_call.1} parent=5 // pred_fallthru
        _
      %p811 = scmp.le.s32.totalorder 2, %s20
      // Predicated region
      $region69: #{tpu_custom_call.1} parent=5 // pred_check
        %p812 = pneg %p811
      $region70: #{tpu_custom_call.1} parent=5 // pred_check_branch
        %814 = sbr.rel (%p812) target = $region72
      $region71: #{tpu_custom_call.1} parent=5 // pred_region
        %s815 = ssub.s32 %s20, 2
        // Predicated region
        $region73: #{tpu_custom_call.1} parent=71 // pred_check
          %p816 = pneg %p199
        $region74: #{tpu_custom_call.1} parent=71 // pred_check_branch
          %818 = sbr.rel (%p816) target = $region76
        $region75: #{tpu_custom_call.1} parent=71 // pred_region
          %p819 = scmp.lt.s32.totalorder %s31, 1
          %s820 = scalar_select %p819, %s31, 1
          %s821 = smul.addr %s820, 8
          %s822 = scalar_lea.vmem %s6, %s821
        $region76: #{tpu_custom_call.1} parent=71 // pred_fallthru
          _
      $region72: #{tpu_custom_call.1} parent=5 // pred_fallthru
        _
    $region6: #{tpu_custom_call.1} parent=1 // loop_footer
      %s24 = sadd.s32 1, %s20
    $region7: #{tpu_custom_call.1} parent=1 // loop_footer_branch
      %19 = sbr.rel target = $region3
    $region8: #{tpu_custom_call.1} parent=1 // loop_exit
      _
    %823 = vsyncpa [#allocation6], 1
    %s824 = scalar_lea.sflag [#allocation6], 1
    %825 = vsyncpa %s824, 1
    %826 = vsyncpa [#allocation8], 1

</llo_original>
